<compile_context>
chip_gen: v7x
topology: tpu7x:2x2x1
jax: 0.10.0
libtpu: 0.0.40
codegen_flags: <defaults>
</compile_context>

<pallas_src>
import jax
import jax.numpy as jnp
from jax.experimental import pallas as pl
from jax.experimental.pallas import tpu as pltpu

HIDDEN = 128


def _round_up(n, m):
    return ((n + m - 1) // m) * m


def dueling_dqn_kernel(x_ref, w1_ref, w2_ref, wq_ref, b_ref, q_ref):
    """fc1 -> relu -> fc2 -> relu -> fused dueling head (single matmul)."""
    mm = w1_ref.dtype                 # matmul operand dtype (bf16 by default)
    h = w1_ref.shape[1]               # hidden width (128)
    a = wq_ref.shape[1]               # action width (narrow output)

    x = x_ref[...].astype(mm)         # cast in-kernel: x travels HBM->VMEM as f32
    b1 = b_ref[0:1, :h]               # [1, 128]  f32
    b2 = b_ref[1:2, :h]               # [1, 128]  f32
    bq = b_ref[2:3, :a]               # [1, A]    f32

    # fc1 + relu  (f32 accumulate / epilogue)
    h1 = jnp.dot(x, w1_ref[...], preferred_element_type=jnp.float32) + b1
    h1 = jnp.maximum(h1, 0.0)

    # fc2 + relu
    h2 = jnp.dot(h1.astype(mm), w2_ref[...],
                 preferred_element_type=jnp.float32) + b2
    h2 = jnp.maximum(h2, 0.0)

    # fused dueling head:  q = h2 @ (wv + wa - mean_a(wa)) + (bv + ba - mean_a(ba))
    q = jnp.dot(h2.astype(mm), wq_ref[...],
                preferred_element_type=jnp.float32) + bq
    q_ref[...] = q.astype(q_ref.dtype)          # narrow [tb, A] store


def prepare_params(params, *, mm_dtype=jnp.bfloat16):
    """One-time prep: fold the dueling head, pack biases, cast matmul weights.

    Call this once per parameter update, NOT per forward call.
    """
    H = params["w1"].shape[1]
    A = params["wa"].shape[1]

    # exact fold of value/advantage streams + mean subtraction (all linear)
    wq = params["wv"] + params["wa"] - jnp.mean(params["wa"], axis=1, keepdims=True)
    bq = params["bv"] + params["ba"] - jnp.mean(params["ba"], axis=1, keepdims=True)

    bias_w = max(H, A)
    biases = jnp.zeros((3, bias_w), jnp.float32)
    biases = biases.at[0, :H].set(params["b1"][0])
    biases = biases.at[1, :H].set(params["b2"][0])
    biases = biases.at[2, :A].set(bq[0])

    return {
        "w1": params["w1"].astype(mm_dtype),
        "w2": params["w2"].astype(mm_dtype),
        "wq": wq.astype(mm_dtype),
        "biases": biases,
    }


def dueling_dqn_forward(x, prep, *, tb=None):
    """x: [B, state_size] float32.  prep: output of prepare_params."""
    B, S = x.shape
    H = prep["w1"].shape[1]
    A = prep["wq"].shape[1]
    bias_w = prep["biases"].shape[1]

    # Pad batch only to sublane granularity (<= 7 extra rows; zero cost when
    # B is already a multiple of 8).  No full tile-sized padded copy of x.
    b_pad = _round_up(max(B, 8), 8)
    x_p = x if b_pad == B else jnp.pad(x, ((0, b_pad - B), (0, 0)))

    # Batch tile: large tiles for HBM pipelining, but keep >= 2 grid steps
    # when possible so v7x can shard the "parallel" axis over both TCs.
    if tb is None:
        if b_pad >= 1024:
            tb = 512
        elif b_pad >= 16:
            tb = _round_up(pl.cdiv(b_pad, 2), 8)
        else:
            tb = b_pad
    tb = min(_round_up(max(tb, 8), 8), b_pad)
    grid = (pl.cdiv(b_pad, tb),)       # partial tail block allowed

    q = pl.pallas_call(
        dueling_dqn_kernel,
        out_shape=jax.ShapeDtypeStruct((b_pad, A), jnp.float32),
        grid=grid,
        in_specs=[
            pl.BlockSpec((tb, S), lambda i: (i, 0)),        # x: tiled over batch
            pl.BlockSpec((S, H), lambda i: (0, 0)),         # weights: resident
            pl.BlockSpec((H, H), lambda i: (0, 0)),
            pl.BlockSpec((H, A), lambda i: (0, 0)),
            pl.BlockSpec((3, bias_w), lambda i: (0, 0)),
        ],
        out_specs=pl.BlockSpec((tb, A), lambda i: (i, 0)),  # narrow output
        compiler_params=pltpu.CompilerParams(
            dimension_semantics=("parallel",)),
    )(x_p, prep["w1"], prep["w2"], prep["wq"], prep["biases"])

    return q if b_pad == B else q[:B]


def init_params(key, state_size, action_size, hidden=HIDDEN):
    """Deterministic init mimicking nn.Linear's U(-1/sqrt(fan_in), 1/sqrt(fan_in))."""
    def linear(key, fan_in, fan_out):
        kw, kb = jax.random.split(key)
        bound = 1.0 / jnp.sqrt(fan_in)
        w = jax.random.uniform(kw, (fan_in, fan_out), jnp.float32, -bound, bound)
        b = jax.random.uniform(kb, (1, fan_out), jnp.float32, -bound, bound)
        return w, b

    k1, k2, k3, k4 = jax.random.split(key, 4)
    w1, b1 = linear(k1, state_size, hidden)
    w2, b2 = linear(k2, hidden, hidden)
    wv, bv = linear(k3, hidden, 1)
    wa, ba = linear(k4, hidden, action_size)
    return {"w1": w1, "b1": b1, "w2": w2, "b2": b2,
            "wv": wv, "bv": bv, "wa": wa, "ba": ba}


def reference_forward(x, p):
    """Plain-JAX reference matching the PyTorch module (f32, highest precision)."""
    hp = "highest"
    h1 = jnp.maximum(jnp.dot(x, p["w1"], precision=hp) + p["b1"], 0.0)
    h2 = jnp.maximum(jnp.dot(h1, p["w2"], precision=hp) + p["b2"], 0.0)
    value = jnp.dot(h2, p["wv"], precision=hp) + p["bv"]
    adv = jnp.dot(h2, p["wa"], precision=hp) + p["ba"]
    return value + adv - jnp.mean(adv, axis=1, keepdims=True)


if __name__ == "__main__":
    batch, state_size, action_size = 2, 16, 4

    key = jax.random.PRNGKey(0)
    kx, kp, kb = jax.random.split(key, 3)
    x = jax.random.normal(kx, (batch, state_size), jnp.float32)
    params = init_params(kp, state_size, action_size)
    q_ref = reference_forward(x, params)

    # 1) default bf16 matmul-operand path (MXU-native on v5e / v6e / v7x)
    prep_bf16 = prepare_params(params)                       # hoisted, done once
    q_bf = jax.block_until_ready(dueling_dqn_forward(x, prep_bf16))
    assert q_bf.shape == (batch, action_size)
    assert jnp.allclose(q_bf, q_ref, atol=5e-2, rtol=5e-2), "bf16 path mismatch"

    # 2) f32 matmul path
    prep_f32 = prepare_params(params, mm_dtype=jnp.float32)
    q32 = jax.block_until_ready(dueling_dqn_forward(x, prep_f32))
    assert q32.shape == (batch, action_size)
    assert jnp.allclose(q32, q_ref, atol=1e-2, rtol=1e-2), "f32 path mismatch"

    # 3) larger batch: multi-step grid with a partial tail block (tb=16, B=40)
    x_big = jax.random.normal(kb, (40, state_size), jnp.float32)
    q_big_ref = reference_forward(x_big, params)
    q_big = jax.block_until_ready(dueling_dqn_forward(x_big, prep_f32, tb=16))
    assert q_big.shape == (40, action_size)
    assert jnp.allclose(q_big, q_big_ref, atol=1e-2, rtol=1e-2), "grid path mismatch"

    # 4) larger batch with the default tile heuristic (>= 2 parallel grid steps)
    q_big_bf = jax.block_until_ready(dueling_dqn_forward(x_big, prep_bf16))
    assert jnp.allclose(q_big_bf, q_big_ref, atol=5e-2, rtol=5e-2), "default-tb mismatch"

    print("KERNEL_OK")
</pallas_src>

<mosaic_0001>
module attributes {stable_mosaic.version = 11 : i64} {
  func.func @dueling_dqn_kernel(%arg0: i32, %arg1: memref<8x16xf32, #tpu.memory_space<vmem>>, %arg2: memref<16x128xbf16, #tpu.memory_space<vmem>>, %arg3: memref<128x128xbf16, #tpu.memory_space<vmem>>, %arg4: memref<128x4xbf16, #tpu.memory_space<vmem>>, %arg5: memref<3x128xf32, #tpu.memory_space<vmem>>, %arg6: memref<8x4xf32, #tpu.memory_space<vmem>>) attributes {dimension_semantics = [#tpu.dimension_semantics<parallel>], iteration_bounds = array<i64: 1>, scalar_prefetch = 0 : i64, scratch_operands = 0 : i64, tpu.core_type = #tpu.core_type<tc>, window_params = [{transform_indices = @transform_0, window_bounds = array<i64: 8, 16>}, {pipeline_mode = #tpu.pipeline_mode<synchronous>, transform_indices = @transform_1, window_bounds = array<i64: 16, 128>}, {pipeline_mode = #tpu.pipeline_mode<synchronous>, transform_indices = @transform_2, window_bounds = array<i64: 128, 128>}, {pipeline_mode = #tpu.pipeline_mode<synchronous>, transform_indices = @transform_3, window_bounds = array<i64: 128, 4>}, {pipeline_mode = #tpu.pipeline_mode<synchronous>, transform_indices = @transform_4, window_bounds = array<i64: 3, 128>}, {transform_indices = @transform_5, window_bounds = array<i64: 8, 4>}]} {
    %c0 = arith.constant 0 : index
    %c0_0 = arith.constant 0 : index
    %0 = vector.load %arg1[%c0, %c0_0] : memref<8x16xf32, #tpu.memory_space<vmem>>, vector<8x16xf32>
    %1 = arith.truncf %0 : vector<8x16xf32> to vector<8x16xbf16>
    %c0_1 = arith.constant 0 : index
    %c0_2 = arith.constant 0 : index
    %2 = vector.load %arg5[%c0_1, %c0_2] : memref<3x128xf32, #tpu.memory_space<vmem>>, vector<1x128xf32>
    %c1 = arith.constant 1 : index
    %c0_3 = arith.constant 0 : index
    %3 = vector.load %arg5[%c1, %c0_3] : memref<3x128xf32, #tpu.memory_space<vmem>>, vector<1x128xf32>
    %c2 = arith.constant 2 : index
    %c0_4 = arith.constant 0 : index
    %4 = vector.load %arg5[%c2, %c0_4] : memref<3x128xf32, #tpu.memory_space<vmem>>, vector<1x4xf32>
    %c0_5 = arith.constant 0 : index
    %c0_6 = arith.constant 0 : index
    %5 = vector.load %arg2[%c0_5, %c0_6] : memref<16x128xbf16, #tpu.memory_space<vmem>>, vector<16x128xbf16>
    %cst = arith.constant dense<0.000000e+00> : vector<8x128xf32>
    %6 = tpu.matmul %1, %5, %cst {dimension_numbers = #tpu.dot_dimension_numbers<[1], [0], [0], [1], [0, 0, 1, 1], [], []>} : vector<8x16xbf16>, vector<16x128xbf16>, vector<8x128xf32> -> vector<8x128xf32>
    %7 = vector.broadcast %2 : vector<1x128xf32> to vector<8x128xf32>
    %8 = arith.addf %6, %7 : vector<8x128xf32>
    %cst_7 = arith.constant 0.000000e+00 : f32
    %9 = vector.broadcast %cst_7 : f32 to vector<8x128xf32>
    %10 = arith.maximumf %8, %9 : vector<8x128xf32>
    %11 = arith.truncf %10 : vector<8x128xf32> to vector<8x128xbf16>
    %c0_8 = arith.constant 0 : index
    %c0_9 = arith.constant 0 : index
    %12 = vector.load %arg3[%c0_8, %c0_9] : memref<128x128xbf16, #tpu.memory_space<vmem>>, vector<128x128xbf16>
    %cst_10 = arith.constant dense<0.000000e+00> : vector<8x128xf32>
    %13 = tpu.matmul %11, %12, %cst_10 {dimension_numbers = #tpu.dot_dimension_numbers<[1], [0], [0], [1], [0, 0, 1, 1], [], []>} : vector<8x128xbf16>, vector<128x128xbf16>, vector<8x128xf32> -> vector<8x128xf32>
    %14 = vector.broadcast %3 : vector<1x128xf32> to vector<8x128xf32>
    %15 = arith.addf %13, %14 : vector<8x128xf32>
    %cst_11 = arith.constant 0.000000e+00 : f32
    %16 = vector.broadcast %cst_11 : f32 to vector<8x128xf32>
    %17 = arith.maximumf %15, %16 : vector<8x128xf32>
    %18 = arith.truncf %17 : vector<8x128xf32> to vector<8x128xbf16>
    %c0_12 = arith.constant 0 : index
    %c0_13 = arith.constant 0 : index
    %19 = vector.load %arg4[%c0_12, %c0_13] : memref<128x4xbf16, #tpu.memory_space<vmem>>, vector<128x4xbf16>
    %cst_14 = arith.constant dense<0.000000e+00> : vector<8x4xf32>
    %20 = tpu.matmul %18, %19, %cst_14 {dimension_numbers = #tpu.dot_dimension_numbers<[1], [0], [0], [1], [0, 0, 1, 1], [], []>} : vector<8x128xbf16>, vector<128x4xbf16>, vector<8x4xf32> -> vector<8x4xf32>
    %21 = vector.broadcast %4 : vector<1x4xf32> to vector<8x4xf32>
    %22 = arith.addf %20, %21 : vector<8x4xf32>
    %c0_15 = arith.constant 0 : index
    %c0_16 = arith.constant 0 : index
    %23 = vector.load %arg6[%c0_15, %c0_16] : memref<8x4xf32, #tpu.memory_space<vmem>>, vector<8x4xf32>
    tpu.vector_store %arg6[%c0_15, %c0_16], %22 {strides = array<i32>} : memref<8x4xf32, #tpu.memory_space<vmem>>, vector<8x4xf32>,
    return
  }
  func.func @transform_0(%arg0: i32) -> (i32, i32) {
    %c0_i32 = arith.constant 0 : i32
    %c0_i32_0 = arith.constant 0 : i32
    return %arg0, %c0_i32 : i32, i32
  }
  func.func @transform_1(%arg0: i32) -> (i32, i32) {
    %c0_i32 = arith.constant 0 : i32
    %c0_i32_0 = arith.constant 0 : i32
    %c0_i32_1 = arith.constant 0 : i32
    return %c0_i32, %c0_i32_0 : i32, i32
  }
  func.func @transform_2(%arg0: i32) -> (i32, i32) {
    %c0_i32 = arith.constant 0 : i32
    %c0_i32_0 = arith.constant 0 : i32
    %c0_i32_1 = arith.constant 0 : i32
    return %c0_i32, %c0_i32_0 : i32, i32
  }
  func.func @transform_3(%arg0: i32) -> (i32, i32) {
    %c0_i32 = arith.constant 0 : i32
    %c0_i32_0 = arith.constant 0 : i32
    %c0_i32_1 = arith.constant 0 : i32
    return %c0_i32, %c0_i32_0 : i32, i32
  }
  func.func @transform_4(%arg0: i32) -> (i32, i32) {
    %c0_i32 = arith.constant 0 : i32
    %c0_i32_0 = arith.constant 0 : i32
    %c0_i32_1 = arith.constant 0 : i32
    return %c0_i32, %c0_i32_0 : i32, i32
  }
  func.func @transform_5(%arg0: i32) -> (i32, i32) {
    %c0_i32 = arith.constant 0 : i32
    %c0_i32_0 = arith.constant 0 : i32
    return %arg0, %c0_i32 : i32, i32
  }
}

</mosaic_0001>

<llo_original>
// kernel: tpu_custom_call.1
$region0: #{tpu_custom_call.1}
  #allocation0 [shape = 'u32[]', space=smem, size = 0x4, offset = 0x4, fixed_abs, tag = 'smem constant byte address 0x4 - core index']
  #allocation1 [shape = 'u32[144,128]{1,0:T(1,128)}', space=vmem, size = 0x12000, scoped, tag = 'internal scratch']
  %s0 = inlined_call_operand.vmem [shape: f32[8,16], index: 0, kind: input, shape index: {}]
  %s1 = inlined_call_operand.hbm [shape: bf16[16,128], index: 1, kind: input, shape index: {}]
  %s2 = inlined_call_operand.vmem [shape: bf16[128,128], index: 2, kind: input, shape index: {}]
  %s3 = inlined_call_operand.vmem [shape: bf16[128,4], index: 3, kind: input, shape index: {}]
  %s4 = inlined_call_operand.vmem [shape: f32[3,128], index: 4, kind: input, shape index: {}]
  %s5 = inlined_call_operand.vmem [shape: f32[8,4], index: 5, kind: output, shape index: {}]
  %s6 = sld [smem:[#allocation0]]
  $region34: #{tpu_custom_call.1} parent=0
    _
  %s8 = ssub.s32 1, %s6
  %s9 = scalar_select 0, %s8, %s6
  $region1: #{tpu_custom_call.1} parent=0
    #allocation2 [shape = 'u8[4096]{0}', space=vmem, size = 0x1000, scoped, tag = 'input window, operand 1, single buffered']
    #allocation3 [shape = 's32[1]{0}', space=sflag, size = 0x4, scoped, tag = 'scoped memory for tpu_custom_call.1']
    %10 = vsyncpa [#allocation3], 0
    // Predicated region
    $region2: #{tpu_custom_call.1} parent=1 // pred_check
      _
    $region3: #{tpu_custom_call.1} parent=1 // pred_check_branch
      %12 = sbr.rel (0) target = $region5
    $region4: #{tpu_custom_call.1} parent=1 // pred_region
      _
    $region5: #{tpu_custom_call.1} parent=1 // pred_fallthru
      _
    // Predicated region
    $region6: #{tpu_custom_call.1} parent=1 // pred_check
      _
    $region7: #{tpu_custom_call.1} parent=1 // pred_check_branch
      %14 = sbr.rel (0) target = $region9
    $region8: #{tpu_custom_call.1} parent=1 // pred_region
      %s16 = ssub.s32 128, 128
      %17 = vsyncadd [#allocation3], %s16
      %s18 = sshll.u32 [#allocation2], 4
      %s19 = int_to_ptr.vmem [resolvable:$true] %s18
      %24 = dma.hbm_to_vmem [thread:$0]  %s1, 128, %s19, [#allocation3], 64, 64, 4
    $region9: #{tpu_custom_call.1} parent=1 // pred_fallthru
      _
    // Predicated region
    $region10: #{tpu_custom_call.1} parent=1 // pred_check
      _
    $region11: #{tpu_custom_call.1} parent=1 // pred_check_branch
      %26 = sbr.rel (0) target = $region13
    $region12: #{tpu_custom_call.1} parent=1 // pred_region
      _
    $region13: #{tpu_custom_call.1} parent=1 // pred_fallthru
      _
    // Predicated region
    $region14: #{tpu_custom_call.1} parent=1 // pred_check
      _
    $region15: #{tpu_custom_call.1} parent=1 // pred_check_branch
      %28 = sbr.rel (0) target = $region17
    $region16: #{tpu_custom_call.1} parent=1 // pred_region
      _
    $region17: #{tpu_custom_call.1} parent=1 // pred_fallthru
      _
    // Predicated region
    $region18: #{tpu_custom_call.1} parent=1 // pred_check
      _
    $region19: #{tpu_custom_call.1} parent=1 // pred_check_branch
      %30 = sbr.rel (0) target = $region21
    $region20: #{tpu_custom_call.1} parent=1 // pred_region
      _
    $region21: #{tpu_custom_call.1} parent=1 // pred_fallthru
      _
    // Predicated region
    $region22: #{tpu_custom_call.1} parent=1 // pred_check
      _
    $region23: #{tpu_custom_call.1} parent=1 // pred_check_branch
      %32 = sbr.rel (0) target = $region25
    $region24: #{tpu_custom_call.1} parent=1 // pred_region
      %33 = dma.done [#allocation3], 128
    $region25: #{tpu_custom_call.1} parent=1 // pred_fallthru
      _
    %v35 = vld [vmem:[%s0] sm:$0xff]
    %v36 = vpack.c.bf16 %v35, %v35
    %v37 = vld [vmem:[%s4] sm:$0x1]
    %v38 = vld [vmem:[%s4 + $0x1] sm:$0x1]
    %v39 = vld [vmem:[%s4 + $0x2] sm:$0x1]
    %v40 = vld [vmem:[#allocation2] sm:$0xf]
    %v41 = vld [vmem:[#allocation2 + $0x4] sm:$0xf]
    %v42 = vlaneseq
    %v43 = vshrl.u32 %v42, 7
    %v44 = vsub.s32 0, %v43
    %v45 = vrot.slane %v37, %v44
    %v48 = vunpack.c.l.b16 %v40
    %v49 = vunpack.c.l.b16 %v41
    %v50 = vpack.c.b16 %v49, %v48
    %vm52 = vcmask 130048
    %v54 = vsel %vm52, %v36, 0
    %56 = vmatprep.subr.bf16.mxu0 0
    %57 = vmatpush1.bf16.msra.mxu0 %v50
    %58 = vmatprep.subr.bf16.mxu0 0
    %59 = vmatpush1.bf16.msra.mxu0 0
    %60 = vmatprep.subr.bf16.mxu0 0
    %61 = vmatpush1.bf16.msra.mxu0 0
    %62 = vmatprep.subr.bf16.mxu0 0
    %63 = vmatpush1.bf16.msra.mxu0 0
    %64 = vmatprep.subr.bf16.mxu0 0
    %65 = vmatpush1.bf16.msra.mxu0 0
    %66 = vmatprep.subr.bf16.mxu0 0
    %67 = vmatpush1.bf16.msra.mxu0 0
    %68 = vmatprep.subr.bf16.mxu0 0
    %69 = vmatpush1.bf16.msra.mxu0 0
    %70 = vmatprep.subr.bf16.mxu0 0
    %71 = vmatpush1.bf16.msra.mxu0 0
    %72 = vmatprep.subr.bf16.mxu0 0
    %73 = vmatpush1.bf16.msra.mxu0 0
    %74 = vmatprep.subr.bf16.mxu0 0
    %75 = vmatpush1.bf16.msra.mxu0 0
    %76 = vmatprep.subr.bf16.mxu0 0
    %77 = vmatpush1.bf16.msra.mxu0 0
    %78 = vmatprep.subr.bf16.mxu0 0
    %79 = vmatpush1.bf16.msra.mxu0 0
    %80 = vmatprep.subr.bf16.mxu0 0
    %81 = vmatpush1.bf16.msra.mxu0 0
    %82 = vmatprep.subr.bf16.mxu0 0
    %83 = vmatpush1.bf16.msra.mxu0 0
    %84 = vmatprep.subr.bf16.mxu0 0
    %85 = vmatpush1.bf16.msra.mxu0 0
    %86 = vmatprep.subr.bf16.mxu0 0
    %87 = vmatpush1.bf16.msra.mxu0 0
    %88 = vmatprep.mubr.bf16.mxu0 0
    %89 = vmatmul.mubr.bf16.gmra.mrb[0].mxu0 %v54
    %v90 = vpop.f32.mrb[0].mxu0
    %v91 = vadd.f32 %v45, %v90
    %v92 = vpop.f32.mrb[0].mxu0
    %v93 = vpop.f32.mrb[0].mxu0
    %v94 = vpop.f32.mrb[0].mxu0
    %95 = vdwg.mxu0
    %v96 = vmax.f32 %v91, 0.0
    %v97 = vpack.c.bf16 %v96, %v96
    %v98 = vld [vmem:[%s2] sm:$0xf]
    %v99 = vld [vmem:[%s2 + $0x4] sm:$0xf]
    %v100 = vld [vmem:[%s2 + $0x8] sm:$0xf]
    %v101 = vld [vmem:[%s2 + $0xc] sm:$0xf]
    %v102 = vld [vmem:[%s2 + $0x10] sm:$0xf]
    %v103 = vld [vmem:[%s2 + $0x14] sm:$0xf]
    %v104 = vld [vmem:[%s2 + $0x18] sm:$0xf]
    %v105 = vld [vmem:[%s2 + $0x1c] sm:$0xf]
    %v106 = vld [vmem:[%s2 + $0x20] sm:$0xf]
    %v107 = vld [vmem:[%s2 + $0x24] sm:$0xf]
    %v108 = vld [vmem:[%s2 + $0x28] sm:$0xf]
    %v109 = vld [vmem:[%s2 + $0x2c] sm:$0xf]
    %v110 = vld [vmem:[%s2 + $0x30] sm:$0xf]
    %v111 = vld [vmem:[%s2 + $0x34] sm:$0xf]
    %v112 = vld [vmem:[%s2 + $0x38] sm:$0xf]
    %v113 = vld [vmem:[%s2 + $0x3c] sm:$0xf]
    %v114 = vlaneseq
    %v115 = vshrl.u32 %v114, 7
    %v116 = vsub.s32 0, %v115
    %v117 = vrot.slane %v38, %v116
    %v134 = vunpack.c.l.b16 %v98
    %v135 = vunpack.c.l.b16 %v99
    %v136 = vunpack.c.l.b16 %v100
    %v137 = vunpack.c.l.b16 %v101
    %v138 = vunpack.c.l.b16 %v102
    %v139 = vunpack.c.l.b16 %v103
    %v140 = vunpack.c.l.b16 %v104
    %v141 = vunpack.c.l.b16 %v105
    %v142 = vunpack.c.l.b16 %v106
    %v143 = vunpack.c.l.b16 %v107
    %v144 = vunpack.c.l.b16 %v108
    %v145 = vunpack.c.l.b16 %v109
    %v146 = vunpack.c.l.b16 %v110
    %v147 = vunpack.c.l.b16 %v111
    %v148 = vunpack.c.l.b16 %v112
    %v149 = vunpack.c.l.b16 %v113
    %v150 = vpack.c.b16 %v135, %v134
    %v151 = vpack.c.b16 %v137, %v136
    %v152 = vpack.c.b16 %v139, %v138
    %v153 = vpack.c.b16 %v141, %v140
    %v154 = vpack.c.b16 %v143, %v142
    %v155 = vpack.c.b16 %v145, %v144
    %v156 = vpack.c.b16 %v147, %v146
    %v157 = vpack.c.b16 %v149, %v148
    %166 = vmatprep.subr.bf16.mxu0 0
    %167 = vmatpush1.bf16.msra.mxu0 %v150
    %168 = vmatprep.subr.bf16.mxu0 0
    %169 = vmatpush1.bf16.msra.mxu0 %v151
    %170 = vmatprep.subr.bf16.mxu0 0
    %171 = vmatpush1.bf16.msra.mxu0 %v152
    %172 = vmatprep.subr.bf16.mxu0 0
    %173 = vmatpush1.bf16.msra.mxu0 %v153
    %174 = vmatprep.subr.bf16.mxu0 0
    %175 = vmatpush1.bf16.msra.mxu0 %v154
    %176 = vmatprep.subr.bf16.mxu0 0
    %177 = vmatpush1.bf16.msra.mxu0 %v155
    %178 = vmatprep.subr.bf16.mxu0 0
    %179 = vmatpush1.bf16.msra.mxu0 %v156
    %180 = vmatprep.subr.bf16.mxu0 0
    %181 = vmatpush1.bf16.msra.mxu0 %v157
    %182 = vmatprep.subr.bf16.mxu0 0
    %183 = vmatpush1.bf16.msra.mxu0 0
    %184 = vmatprep.subr.bf16.mxu0 0
    %185 = vmatpush1.bf16.msra.mxu0 0
    %186 = vmatprep.subr.bf16.mxu0 0
    %187 = vmatpush1.bf16.msra.mxu0 0
    %188 = vmatprep.subr.bf16.mxu0 0
    %189 = vmatpush1.bf16.msra.mxu0 0
    %190 = vmatprep.subr.bf16.mxu0 0
    %191 = vmatpush1.bf16.msra.mxu0 0
    %192 = vmatprep.subr.bf16.mxu0 0
    %193 = vmatpush1.bf16.msra.mxu0 0
    %194 = vmatprep.subr.bf16.mxu0 0
    %195 = vmatpush1.bf16.msra.mxu0 0
    %196 = vmatprep.subr.bf16.mxu0 0
    %197 = vmatpush1.bf16.msra.mxu0 0
    %198 = vmatprep.mubr.bf16.mxu0 0
    %199 = vmatmul.mubr.bf16.gmra.mrb[0].mxu0 %v97
    %v200 = vpop.f32.mrb[0].mxu0
    %v201 = vadd.f32 %v117, %v200
    %v202 = vpop.f32.mrb[0].mxu0
    %v203 = vpop.f32.mrb[0].mxu0
    %v204 = vpop.f32.mrb[0].mxu0
    %205 = vdwg.mxu0
    %v206 = vmax.f32 %v201, 0.0
    %v207 = vpack.c.bf16 %v206, %v206
    %v208 = vld [vmem:[%s3] sm:$0xf]
    %v209 = vld [vmem:[%s3 + $0x4] sm:$0xf]
    %v210 = vld [vmem:[%s3 + $0x8] sm:$0xf]
    %v211 = vld [vmem:[%s3 + $0xc] sm:$0xf]
    %v212 = vld [vmem:[%s3 + $0x10] sm:$0xf]
    %v213 = vld [vmem:[%s3 + $0x14] sm:$0xf]
    %v214 = vld [vmem:[%s3 + $0x18] sm:$0xf]
    %v215 = vld [vmem:[%s3 + $0x1c] sm:$0xf]
    %v216 = vld [vmem:[%s3 + $0x20] sm:$0xf]
    %v217 = vld [vmem:[%s3 + $0x24] sm:$0xf]
    %v218 = vld [vmem:[%s3 + $0x28] sm:$0xf]
    %v219 = vld [vmem:[%s3 + $0x2c] sm:$0xf]
    %v220 = vld [vmem:[%s3 + $0x30] sm:$0xf]
    %v221 = vld [vmem:[%s3 + $0x34] sm:$0xf]
    %v222 = vld [vmem:[%s3 + $0x38] sm:$0xf]
    %v223 = vld [vmem:[%s3 + $0x3c] sm:$0xf]
    %v224 = vlaneseq
    %v225 = vshrl.u32 %v224, 7
    %v226 = vsub.s32 0, %v225
    %v227 = vrot.slane %v39, %v226
    %v244 = vunpack.c.l.b16 %v208
    %v245 = vunpack.c.l.b16 %v209
    %v246 = vunpack.c.l.b16 %v210
    %v247 = vunpack.c.l.b16 %v211
    %v248 = vunpack.c.l.b16 %v212
    %v249 = vunpack.c.l.b16 %v213
    %v250 = vunpack.c.l.b16 %v214
    %v251 = vunpack.c.l.b16 %v215
    %v252 = vunpack.c.l.b16 %v216
    %v253 = vunpack.c.l.b16 %v217
    %v254 = vunpack.c.l.b16 %v218
    %v255 = vunpack.c.l.b16 %v219
    %v256 = vunpack.c.l.b16 %v220
    %v257 = vunpack.c.l.b16 %v221
    %v258 = vunpack.c.l.b16 %v222
    %v259 = vunpack.c.l.b16 %v223
    %v260 = vpack.c.b16 %v245, %v244
    %v261 = vpack.c.b16 %v247, %v246
    %v262 = vpack.c.b16 %v249, %v248
    %v263 = vpack.c.b16 %v251, %v250
    %v264 = vpack.c.b16 %v253, %v252
    %v265 = vpack.c.b16 %v255, %v254
    %v266 = vpack.c.b16 %v257, %v256
    %v267 = vpack.c.b16 %v259, %v258
    %276 = vmatprep.subr.bf16.mxu0 0
    %277 = vmatpush1.bf16.msra.mxu0 %v260
    %278 = vmatprep.subr.bf16.mxu0 0
    %279 = vmatpush1.bf16.msra.mxu0 %v261
    %280 = vmatprep.subr.bf16.mxu0 0
    %281 = vmatpush1.bf16.msra.mxu0 %v262
    %282 = vmatprep.subr.bf16.mxu0 0
    %283 = vmatpush1.bf16.msra.mxu0 %v263
    %284 = vmatprep.subr.bf16.mxu0 0
    %285 = vmatpush1.bf16.msra.mxu0 %v264
    %286 = vmatprep.subr.bf16.mxu0 0
    %287 = vmatpush1.bf16.msra.mxu0 %v265
    %288 = vmatprep.subr.bf16.mxu0 0
    %289 = vmatpush1.bf16.msra.mxu0 %v266
    %290 = vmatprep.subr.bf16.mxu0 0
    %291 = vmatpush1.bf16.msra.mxu0 %v267
    %292 = vmatprep.subr.bf16.mxu0 0
    %293 = vmatpush1.bf16.msra.mxu0 0
    %294 = vmatprep.subr.bf16.mxu0 0
    %295 = vmatpush1.bf16.msra.mxu0 0
    %296 = vmatprep.subr.bf16.mxu0 0
    %297 = vmatpush1.bf16.msra.mxu0 0
    %298 = vmatprep.subr.bf16.mxu0 0
    %299 = vmatpush1.bf16.msra.mxu0 0
    %300 = vmatprep.subr.bf16.mxu0 0
    %301 = vmatpush1.bf16.msra.mxu0 0
    %302 = vmatprep.subr.bf16.mxu0 0
    %303 = vmatpush1.bf16.msra.mxu0 0
    %304 = vmatprep.subr.bf16.mxu0 0
    %305 = vmatpush1.bf16.msra.mxu0 0
    %306 = vmatprep.subr.bf16.mxu0 0
    %307 = vmatpush1.bf16.msra.mxu0 0
    %308 = vmatprep.mubr.bf16.mxu0 0
    %309 = vmatmul.mubr.bf16.gmra.mrb[0].mxu0 %v207
    %v310 = vpop.f32.mrb[0].mxu0
    %v311 = vadd.f32 %v227, %v310
    %v312 = vpop.f32.mrb[0].mxu0
    %v313 = vpop.f32.mrb[0].mxu0
    %v314 = vpop.f32.mrb[0].mxu0
    %315 = vdwg.mxu0
    %vm316 = vcmask 31744
    %317 = vst.msk [vmem:[%s5] sm:$0xff] %vm316, %v311
    // Predicated region
    $region26: #{tpu_custom_call.1} parent=1 // pred_check
      _
    $region27: #{tpu_custom_call.1} parent=1 // pred_check_branch
      %319 = sbr.rel (0) target = $region29
    $region28: #{tpu_custom_call.1} parent=1 // pred_region
      _
    $region29: #{tpu_custom_call.1} parent=1 // pred_fallthru
      _
    // Predicated region
    $region30: #{tpu_custom_call.1} parent=1 // pred_check
      _
    $region31: #{tpu_custom_call.1} parent=1 // pred_check_branch
      %321 = sbr.rel (0) target = $region33
    $region32: #{tpu_custom_call.1} parent=1 // pred_region
      _
    $region33: #{tpu_custom_call.1} parent=1 // pred_fallthru
      _
    %322 = vsyncpa [#allocation3], 1

</llo_original>
